<compile_context>
chip_gen: v7x
topology: tpu7x:2x2x1
jax: 0.10.0
libtpu: 0.0.40
codegen_flags: <defaults>
</compile_context>

<pallas_src>
import jax
import jax.numpy as jnp
from jax.experimental import pallas as pl
from jax.experimental.pallas import tpu as pltpu


# ----------------------------------------------------------------------------
# Config (mirrors the PyTorch Config used by MainModel)
# ----------------------------------------------------------------------------
class Config:
    modalities = ("metric", "log")
    alert_embedding_dim = 32
    graph_hidden_dim = 32
    graph_out = 16
    graph_layers = 2
    aggregator = "mean"
    feat_drop = 0.0
    linear_hidden = [64]
    ft_num = 5


OUT_LANES = 128   # lane-dense slab width (>=128 -> unmasked vst / vld)


# ----------------------------------------------------------------------------
# Fused forward kernel
# ----------------------------------------------------------------------------
def _make_fused_kernel(plan, out_rows):
    """Single fused kernel.

    Refs: adj (f32 [N,N]), x_cat (bf16 [N,Din0]), pool (f32 [G_pad,N]),
          w_slab (bf16 [W_ROWS,128]), b_slab (f32 [B_ROWS,128]),
          out (f32 [out_rows,128]).
    """
    enc_plan = plan["enc"]
    head_plan = plan["head"]

    def kernel(adj_ref, x_ref, pool_ref, w_ref, b_ref, out_ref):
        a = adj_ref[...]                 # f32 [N, N]   (row-normalized mean agg)
        h = x_ref[...]                   # bf16 [N, Din0]  (both modalities)
        e = None

        # --- GraphSAGE layers (both modalities via block-diagonal weights,
        #     W_self | W_neigh packed laterally -> one h-side matmul/layer) ---
        for lp in enc_plan:
            r0, din, dout, brow = lp["w_row"], lp["din"], lp["dout"], lp["b_row"]
            w = w_ref[r0:r0 + din, :]                                   # bf16 [din,128]
            yz = jnp.dot(h, w, preferred_element_type=jnp.float32)      # [N,128] f32
            # self branch + neighbor branch (A @ z kept in f32, no re-rounding)
            y = yz[:, :dout] + jnp.dot(a, yz[:, dout:2 * dout],
                                       preferred_element_type=jnp.float32)
            y = y + b_ref[brow:brow + 1, :dout]                         # f32 epilogue
            if lp["relu"]:
                y = jnp.maximum(y, 0.0)
            e = y                                                       # f32 [N, dout]
            h = y.astype(jnp.bfloat16)

        # --- mean-pool readout: f = pool @ e  (f32 operands) ---
        f = jnp.dot(pool_ref[...], e, preferred_element_type=jnp.float32)  # [G_pad, fuse]

        # --- fused locator + classifier head on row-concatenated [e; f] ---
        ef = jnp.concatenate([e, f], axis=0)                            # f32 [rows, fuse]
        cur = ef
        for lp in head_plan:
            r0, din, brow = lp["w_row"], lp["din"], lp["b_row"]
            wtot = lp["d_loc"] + lp["d_cls"]
            w = w_ref[r0:r0 + din, :]                                   # bf16 [din,128]
            o = jnp.dot(cur.astype(jnp.bfloat16), w,
                        preferred_element_type=jnp.float32)[:, :wtot]
            o = o + b_ref[brow:brow + 1, :wtot]
            if lp["relu"]:
                o = jnp.maximum(o, 0.0)
            cur = o                                                     # f32

        # cur lanes: [0] root logit, [1:1+ft_num] type logits (valid per-row-block).
        rows = ef.shape[0]                      # == out_rows (pool rows pre-padded)
        pad_l = OUT_LANES - ef.shape[1] - cur.shape[1]
        out_ref[...] = jnp.concatenate(
            [ef, cur, jnp.zeros((rows, pad_l), jnp.float32)], axis=1)

    return kernel


# ----------------------------------------------------------------------------
# Parameters
# ----------------------------------------------------------------------------
def _glorot(key, shape):
    fan_in, fan_out = shape[0], shape[1]
    scale = jnp.sqrt(6.0 / (fan_in + fan_out))
    return jax.random.uniform(key, shape, jnp.float32, -scale, scale)


def init_params(config, key):
    params = {"encoders": {}, "classifier": [], "locator": []}
    keys = jax.random.split(key, 64)
    ki = 0

    for m in config.modalities:
        dims = ([config.alert_embedding_dim]
                + [config.graph_hidden_dim] * (config.graph_layers - 1)
                + [config.graph_out])
        layers = []
        for li in range(config.graph_layers):
            din, dout = dims[li], dims[li + 1]
            layers.append({
                "w_self": _glorot(keys[ki], (din, dout)),
                "w_neigh": _glorot(keys[ki + 1], (din, dout)),
                "b": jnp.zeros((dout,), jnp.float32),
            })
            ki += 2
        params["encoders"][m] = layers

    def mlp_params(in_dim, hiddens, out_dim):
        nonlocal ki
        dims = [in_dim] + list(hiddens) + [out_dim]
        layers = []
        for li in range(len(dims) - 1):
            layers.append({
                "w": _glorot(keys[ki], (dims[li], dims[li + 1])),
                "b": jnp.zeros((dims[li + 1],), jnp.float32),
            })
            ki += 1
        return layers

    fuse_dim = len(config.modalities) * config.graph_out
    params["classifier"] = mlp_params(fuse_dim, config.linear_hidden,
                                      config.ft_num)
    params["locator"] = mlp_params(fuse_dim, config.linear_hidden, 1)
    return params


def _block_diag(mats):
    rows = sum(m.shape[0] for m in mats)
    cols = sum(m.shape[1] for m in mats)
    out = jnp.zeros((rows, cols), mats[0].dtype)
    r = c = 0
    for m in mats:
        out = out.at[r:r + m.shape[0], c:c + m.shape[1]].set(m)
        r += m.shape[0]
        c += m.shape[1]
    return out


def _pad_lanes(x, width=OUT_LANES):
    if x.ndim == 1:
        x = x.reshape(1, -1)
    pad = width - x.shape[1]
    if pad > 0:
        x = jnp.concatenate([x, jnp.zeros((x.shape[0], pad), x.dtype)], axis=1)
    return x


def pack_model(params, config):
    """One-time host-side packing into two VMEM slabs + static slicing plan.

    Weight slab (bf16, [sum(Din), 128]):
      per encoder layer: [blockdiag(W_self) | blockdiag(W_neigh)] (lateral),
      head layer 0:      [W_loc | W_cls]   (lateral),
      head layers >0:    blockdiag(W_loc, W_cls),
      all zero-padded to 128 lanes.
    Bias slab (f32, [8, 128]): one 128-lane row per layer, zero-padded.
    """
    mods = config.modalities
    w_rows, b_rows = [], []
    plan_enc, plan_head = [], []
    row = 0

    for li in range(config.graph_layers):
        ws = _block_diag([params["encoders"][m][li]["w_self"] for m in mods])
        wn = _block_diag([params["encoders"][m][li]["w_neigh"] for m in mods])
        din, dout = ws.shape
        b = jnp.concatenate([params["encoders"][m][li]["b"] for m in mods])
        plan_enc.append(dict(w_row=row, din=din, dout=dout, b_row=len(b_rows),
                             relu=(li < config.graph_layers - 1)))
        w_rows.append(_pad_lanes(jnp.concatenate([ws, wn], axis=1)))
        b_rows.append(_pad_lanes(b))
        row += din

    loc, cls = params["locator"], params["classifier"]
    nl = len(loc)
    for li in range(nl):
        wl, bl = loc[li]["w"], loc[li]["b"]
        wc, bc = cls[li]["w"], cls[li]["b"]
        if li == 0:
            w = jnp.concatenate([wl, wc], axis=1)      # lateral: shared input e/f
            din = wl.shape[0]
        else:
            w = _block_diag([wl, wc])                   # block-diag: split lanes
            din = wl.shape[0] + wc.shape[0]
        plan_head.append(dict(w_row=row, din=din, d_loc=wl.shape[1],
                              d_cls=wc.shape[1], b_row=len(b_rows),
                              relu=(li < nl - 1)))
        w_rows.append(_pad_lanes(w))
        b_rows.append(_pad_lanes(jnp.concatenate([bl, bc])))
        row += din

    w_slab = jnp.concatenate(w_rows, axis=0).astype(jnp.bfloat16)
    b_mat = jnp.concatenate(b_rows, axis=0).astype(jnp.float32)
    nb = b_mat.shape[0]
    nb_pad = ((nb + 7) // 8) * 8
    if nb_pad > nb:
        b_mat = jnp.concatenate(
            [b_mat, jnp.zeros((nb_pad - nb, OUT_LANES), jnp.float32)], axis=0)
    plan = dict(enc=plan_enc, head=plan_head)
    return w_slab, b_mat, plan


# ----------------------------------------------------------------------------
# Forward pass (single grid-less pallas_call, 5 inputs, 1 output slab)
# ----------------------------------------------------------------------------
def main_model_forward(w_slab, b_slab, plan, config, adj, pool, ndata):
    mods = config.modalities
    N = adj.shape[0]
    G = pool.shape[0]
    go = config.graph_out
    fuse = len(mods) * go
    ft = config.ft_num

    # Pad pool rows to a sublane multiple so every matmul has M >= 8 and the
    # node/graph row blocks stay sublane-aligned in the output slab.
    g_pad = max(8, ((G + 7) // 8) * 8)
    pool_pad = jnp.zeros((g_pad, N), jnp.float32).at[:G, :].set(
        pool.astype(jnp.float32))
    out_rows = N + g_pad

    x_cat = jnp.concatenate([ndata[m] for m in mods],
                            axis=1).astype(jnp.bfloat16)
    adj_f32 = adj.astype(jnp.float32)

    kernel = _make_fused_kernel(plan, out_rows)
    vspec = pl.BlockSpec(memory_space=pltpu.MemorySpace.VMEM)

    slab = pl.pallas_call(
        kernel,
        out_shape=jax.ShapeDtypeStruct((out_rows, OUT_LANES), jnp.float32),
        in_specs=[vspec, vspec, vspec, vspec, vspec],
        out_specs=vspec,
    )(adj_f32, x_cat, pool_pad, w_slab, b_slab)

    e = slab[:N, :fuse]
    root_logit = slab[:N, fuse:fuse + 1]
    f = slab[N:N + G, :fuse]
    type_logit = slab[N:N + G, fuse + 1:fuse + 1 + ft]

    fs = {m: f[:, i * go:(i + 1) * go] for i, m in enumerate(mods)}
    es = {m: e[:, i * go:(i + 1) * go] for i, m in enumerate(mods)}
    return fs, es, root_logit, type_logit


# ----------------------------------------------------------------------------
# Pure-JAX f32 reference (numerical check)
# ----------------------------------------------------------------------------
def reference_forward(params, config, adj, pool, ndata):
    fs, es = {}, {}
    for m in config.modalities:
        h = ndata[m]
        for li, layer in enumerate(params["encoders"][m]):
            y = h @ layer["w_self"] + (adj @ h) @ layer["w_neigh"] + layer["b"]
            if li < len(params["encoders"][m]) - 1:
                y = jnp.maximum(y, 0.0)
            h = y
        es[m] = h
        fs[m] = pool @ h
    f = jnp.concatenate([fs[m] for m in config.modalities], axis=1)
    e = jnp.concatenate([es[m] for m in config.modalities], axis=1)

    def mlp(layers, x):
        cur = x
        for li, layer in enumerate(layers):
            cur = cur @ layer["w"] + layer["b"]
            if li < len(layers) - 1:
                cur = jnp.maximum(cur, 0.0)
        return cur

    return fs, es, mlp(params["locator"], e), mlp(params["classifier"], f)


# ----------------------------------------------------------------------------
# Main
# ----------------------------------------------------------------------------
if __name__ == "__main__":
    config = Config()
    key = jax.random.PRNGKey(0)
    k_param, k_adj, k_m, k_l = jax.random.split(key, 4)

    # small batched graph: 2 graphs x 16 nodes each, block-diagonal adjacency
    n_graphs, nodes_per_graph = 2, 16
    N = n_graphs * nodes_per_graph

    a_full = (jax.random.uniform(k_adj, (N, N)) < 0.25).astype(jnp.float32)
    block_mask = jnp.kron(jnp.eye(n_graphs, dtype=jnp.float32),
                          jnp.ones((nodes_per_graph, nodes_per_graph),
                                   jnp.float32))
    a_full = a_full * block_mask
    a_full = a_full * (1.0 - jnp.eye(N))          # no self loops
    deg = jnp.sum(a_full, axis=1, keepdims=True)
    adj = a_full / jnp.maximum(deg, 1.0)          # row-normalized mean aggregation

    pool = jnp.kron(jnp.eye(n_graphs, dtype=jnp.float32),
                    jnp.full((1, nodes_per_graph), 1.0 / nodes_per_graph,
                             jnp.float32))

    ndata = {
        "metric": jax.random.normal(k_m, (N, config.alert_embedding_dim),
                                    jnp.float32),
        "log": jax.random.normal(k_l, (N, config.alert_embedding_dim),
                                 jnp.float32),
    }

    params = init_params(config, k_param)
    w_slab, b_slab, plan = pack_model(params, config)

    fs, es, root_logit, type_logit = main_model_forward(
        w_slab, b_slab, plan, config, adj, pool, ndata)
    jax.block_until_ready(root_logit)
    jax.block_until_ready(type_logit)

    # shape checks
    assert type_logit.shape == (n_graphs, config.ft_num)
    assert root_logit.shape == (N, 1)
    assert fs["metric"].shape == (n_graphs, config.graph_out)
    assert es["log"].shape == (N, config.graph_out)

    # loose numerical check vs. f32 reference (bf16 MXU operands for weights)
    fs_r, es_r, root_r, type_r = reference_forward(params, config, adj, pool,
                                                   ndata)
    assert jnp.allclose(root_logit, root_r, atol=1e-1, rtol=1e-1)
    assert jnp.allclose(type_logit, type_r, atol=1e-1, rtol=1e-1)
    assert jnp.allclose(es["metric"], es_r["metric"], atol=1e-1, rtol=1e-1)
    assert jnp.allclose(es["log"], es_r["log"], atol=1e-1, rtol=1e-1)
    assert jnp.allclose(fs["metric"], fs_r["metric"], atol=1e-1, rtol=1e-1)
    assert jnp.allclose(fs["log"], fs_r["log"], atol=1e-1, rtol=1e-1)

    print("KERNEL_OK")
</pallas_src>

<mosaic_0001>
module attributes {stable_mosaic.version = 11 : i64} {
  func.func @kernel(%arg0: memref<32x32xf32, #tpu.memory_space<vmem>>, %arg1: memref<32x64xbf16, #tpu.memory_space<vmem>>, %arg2: memref<8x32xf32, #tpu.memory_space<vmem>>, %arg3: memref<288x128xbf16, #tpu.memory_space<vmem>>, %arg4: memref<8x128xf32, #tpu.memory_space<vmem>>, %arg5: memref<40x128xf32, #tpu.memory_space<vmem>>) attributes {dimension_semantics = [], scalar_prefetch = 0 : i64, scratch_operands = 0 : i64, tpu.core_type = #tpu.core_type<tc>} {
    %c0 = arith.constant 0 : index
    %c0_0 = arith.constant 0 : index
    %0 = vector.load %arg0[%c0, %c0_0] : memref<32x32xf32, #tpu.memory_space<vmem>>, vector<32x32xf32>
    %c0_1 = arith.constant 0 : index
    %c0_2 = arith.constant 0 : index
    %1 = vector.load %arg1[%c0_1, %c0_2] : memref<32x64xbf16, #tpu.memory_space<vmem>>, vector<32x64xbf16>
    %c0_3 = arith.constant 0 : index
    %c0_4 = arith.constant 0 : index
    %2 = vector.load %arg3[%c0_3, %c0_4] : memref<288x128xbf16, #tpu.memory_space<vmem>>, vector<64x128xbf16>
    %cst = arith.constant dense<0.000000e+00> : vector<32x128xf32>
    %3 = tpu.matmul %1, %2, %cst {dimension_numbers = #tpu.dot_dimension_numbers<[1], [0], [0], [1], [0, 0, 1, 1], [], []>} : vector<32x64xbf16>, vector<64x128xbf16>, vector<32x128xf32> -> vector<32x128xf32>
    %4 = vector.extract_strided_slice %3 {offsets = [0, 0], sizes = [32, 64], strides = [1, 1]} : vector<32x128xf32> to vector<32x64xf32>
    %5 = vector.extract_strided_slice %3 {offsets = [0, 64], sizes = [32, 64], strides = [1, 1]} : vector<32x128xf32> to vector<32x64xf32>
    %cst_5 = arith.constant dense<0.000000e+00> : vector<32x64xf32>
    %6 = tpu.matmul %0, %5, %cst_5 {dimension_numbers = #tpu.dot_dimension_numbers<[1], [0], [0], [1], [0, 0, 1, 1], [], []>} : vector<32x32xf32>, vector<32x64xf32>, vector<32x64xf32> -> vector<32x64xf32>
    %7 = arith.addf %4, %6 : vector<32x64xf32>
    %c0_6 = arith.constant 0 : index
    %c0_7 = arith.constant 0 : index
    %8 = vector.load %arg4[%c0_6, %c0_7] : memref<8x128xf32, #tpu.memory_space<vmem>>, vector<1x64xf32>
    %9 = vector.broadcast %8 : vector<1x64xf32> to vector<32x64xf32>
    %10 = arith.addf %7, %9 : vector<32x64xf32>
    %cst_8 = arith.constant 0.000000e+00 : f32
    %11 = vector.broadcast %cst_8 : f32 to vector<32x64xf32>
    %12 = arith.maximumf %10, %11 : vector<32x64xf32>
    %13 = arith.truncf %12 : vector<32x64xf32> to vector<32x64xbf16>
    %c64 = arith.constant 64 : index
    %c0_9 = arith.constant 0 : index
    %14 = vector.load %arg3[%c64, %c0_9] : memref<288x128xbf16, #tpu.memory_space<vmem>>, vector<64x128xbf16>
    %cst_10 = arith.constant dense<0.000000e+00> : vector<32x128xf32>
    %15 = tpu.matmul %13, %14, %cst_10 {dimension_numbers = #tpu.dot_dimension_numbers<[1], [0], [0], [1], [0, 0, 1, 1], [], []>} : vector<32x64xbf16>, vector<64x128xbf16>, vector<32x128xf32> -> vector<32x128xf32>
    %16 = vector.extract_strided_slice %15 {offsets = [0, 0], sizes = [32, 32], strides = [1, 1]} : vector<32x128xf32> to vector<32x32xf32>
    %17 = vector.extract_strided_slice %15 {offsets = [0, 32], sizes = [32, 32], strides = [1, 1]} : vector<32x128xf32> to vector<32x32xf32>
    %cst_11 = arith.constant dense<0.000000e+00> : vector<32x32xf32>
    %18 = tpu.matmul %0, %17, %cst_11 {dimension_numbers = #tpu.dot_dimension_numbers<[1], [0], [0], [1], [0, 0, 1, 1], [], []>} : vector<32x32xf32>, vector<32x32xf32>, vector<32x32xf32> -> vector<32x32xf32>
    %19 = arith.addf %16, %18 : vector<32x32xf32>
    %c1 = arith.constant 1 : index
    %c0_12 = arith.constant 0 : index
    %20 = vector.load %arg4[%c1, %c0_12] : memref<8x128xf32, #tpu.memory_space<vmem>>, vector<1x32xf32>
    %21 = vector.broadcast %20 : vector<1x32xf32> to vector<32x32xf32>
    %22 = arith.addf %19, %21 : vector<32x32xf32>
    %c0_13 = arith.constant 0 : index
    %c0_14 = arith.constant 0 : index
    %23 = vector.load %arg2[%c0_13, %c0_14] : memref<8x32xf32, #tpu.memory_space<vmem>>, vector<8x32xf32>
    %cst_15 = arith.constant dense<0.000000e+00> : vector<8x32xf32>
    %24 = tpu.matmul %23, %22, %cst_15 {dimension_numbers = #tpu.dot_dimension_numbers<[1], [0], [0], [1], [0, 0, 1, 1], [], []>} : vector<8x32xf32>, vector<32x32xf32>, vector<8x32xf32> -> vector<8x32xf32>
    %25 = tpu.concatenate %22, %24 in 0 : vector<32x32xf32>, vector<8x32xf32> -> vector<40x32xf32>
    %c128 = arith.constant 128 : index
    %c0_16 = arith.constant 0 : index
    %26 = vector.load %arg3[%c128, %c0_16] : memref<288x128xbf16, #tpu.memory_space<vmem>>, vector<32x128xbf16>
    %27 = arith.truncf %25 : vector<40x32xf32> to vector<40x32xbf16>
    %cst_17 = arith.constant dense<0.000000e+00> : vector<40x128xf32>
    %28 = tpu.matmul %27, %26, %cst_17 {dimension_numbers = #tpu.dot_dimension_numbers<[1], [0], [0], [1], [0, 0, 1, 1], [], []>} : vector<40x32xbf16>, vector<32x128xbf16>, vector<40x128xf32> -> vector<40x128xf32>
    %c2 = arith.constant 2 : index
    %c0_18 = arith.constant 0 : index
    %29 = vector.load %arg4[%c2, %c0_18] : memref<8x128xf32, #tpu.memory_space<vmem>>, vector<1x128xf32>
    %30 = vector.broadcast %29 : vector<1x128xf32> to vector<40x128xf32>
    %31 = arith.addf %28, %30 : vector<40x128xf32>
    %cst_19 = arith.constant 0.000000e+00 : f32
    %32 = vector.broadcast %cst_19 : f32 to vector<40x128xf32>
    %33 = arith.maximumf %31, %32 : vector<40x128xf32>
    %c160 = arith.constant 160 : index
    %c0_20 = arith.constant 0 : index
    %34 = vector.load %arg3[%c160, %c0_20] : memref<288x128xbf16, #tpu.memory_space<vmem>>, vector<128x128xbf16>
    %35 = arith.truncf %33 : vector<40x128xf32> to vector<40x128xbf16>
    %cst_21 = arith.constant dense<0.000000e+00> : vector<40x128xf32>
    %36 = tpu.matmul %35, %34, %cst_21 {dimension_numbers = #tpu.dot_dimension_numbers<[1], [0], [0], [1], [0, 0, 1, 1], [], []>} : vector<40x128xbf16>, vector<128x128xbf16>, vector<40x128xf32> -> vector<40x128xf32>
    %37 = vector.extract_strided_slice %36 {offsets = [0, 0], sizes = [40, 6], strides = [1, 1]} : vector<40x128xf32> to vector<40x6xf32>
    %c3 = arith.constant 3 : index
    %c0_22 = arith.constant 0 : index
    %38 = vector.load %arg4[%c3, %c0_22] : memref<8x128xf32, #tpu.memory_space<vmem>>, vector<1x6xf32>
    %39 = vector.broadcast %38 : vector<1x6xf32> to vector<40x6xf32>
    %40 = arith.addf %37, %39 : vector<40x6xf32>
    %cst_23 = arith.constant 0.000000e+00 : f32
    %41 = vector.broadcast %cst_23 : f32 to vector<40x90xf32>
    %42 = tpu.concatenate %25, %40, %41 in 1 : vector<40x32xf32>, vector<40x6xf32>, vector<40x90xf32> -> vector<40x128xf32>
    %c0_24 = arith.constant 0 : index
    %c0_25 = arith.constant 0 : index
    %43 = vector.load %arg5[%c0_24, %c0_25] : memref<40x128xf32, #tpu.memory_space<vmem>>, vector<40x128xf32>
    tpu.vector_store %arg5[%c0_24, %c0_25], %42 {strides = array<i32>} : memref<40x128xf32, #tpu.memory_space<vmem>>, vector<40x128xf32>,
    return
  }
}

</mosaic_0001>

<llo_original>
// kernel: tpu_custom_call.1
$region0: #{tpu_custom_call.1}
  #allocation0 [shape = 'u32[]', space=smem, size = 0x4, offset = 0x4, fixed_abs, tag = 'smem constant byte address 0x4 - core index']
  #allocation1 [shape = 'u32[144,128]{1,0:T(1,128)}', space=vmem, size = 0x12000, scoped, tag = 'internal scratch']
  %s0 = inlined_call_operand.hbm [shape: f32[32,32], index: 0, kind: input, shape index: {}]
  %s1 = inlined_call_operand.hbm [shape: bf16[32,64], index: 1, kind: input, shape index: {}]
  %s2 = inlined_call_operand.hbm [shape: f32[8,32], index: 2, kind: input, shape index: {}]
  %s3 = inlined_call_operand.hbm [shape: bf16[288,128], index: 3, kind: input, shape index: {}]
  %s4 = inlined_call_operand.vmem [shape: f32[8,128], index: 4, kind: input, shape index: {}]
  %s5 = inlined_call_operand.hbm [shape: f32[40,128], index: 5, kind: output, shape index: {}]
  %s6 = sld [smem:[#allocation0]]
  $region46: #{tpu_custom_call.1} parent=0
    _
  %s8 = ssub.s32 1, %s6
  %s9 = scalar_select 0, %s8, %s6
  $region1: #{tpu_custom_call.1} parent=0
    #allocation2 [shape = 'u8[16384]{0}', space=vmem, size = 0x4000, scoped, tag = 'input window, operand 0, single buffered']
    #allocation3 [shape = 's32[1]{0}', space=sflag, size = 0x4, scoped, tag = 'scoped memory for tpu_custom_call.1']
    #allocation4 [shape = 's32[1]{0}', space=sflag, size = 0x4, scoped, tag = 'scoped memory for tpu_custom_call.1']
    #allocation5 [shape = 'u8[8192]{0}', space=vmem, size = 0x2000, scoped, tag = 'input window, operand 1, single buffered']
    #allocation6 [shape = 's32[1]{0}', space=sflag, size = 0x4, scoped, tag = 'scoped memory for tpu_custom_call.1']
    #allocation7 [shape = 'u8[4096]{0}', space=vmem, size = 0x1000, scoped, tag = 'input window, operand 2, single buffered']
    #allocation8 [shape = 'u8[73728]{0}', space=vmem, size = 0x12000, scoped, tag = 'input window, operand 3, single buffered']
    #allocation9 [shape = 's32[1]{0}', space=sflag, size = 0x4, scoped, tag = 'scoped memory for tpu_custom_call.1']
    #allocation10 [shape = 'u8[20480]{0}', space=vmem, size = 0x5000, scoped, tag = 'output window, operand 0, single buffered']
    %10 = vsyncpa [#allocation3], 0
    %11 = vsyncpa [#allocation6], 0
    %12 = vsyncpa [#allocation9], 0
    %13 = vsyncpa [#allocation4], 0
    // Predicated region
    $region2: #{tpu_custom_call.1} parent=1 // pred_check
      _
    $region3: #{tpu_custom_call.1} parent=1 // pred_check_branch
      %15 = sbr.rel (0) target = $region5
    $region4: #{tpu_custom_call.1} parent=1 // pred_region
      %s17 = ssub.s32 512, 512
      %18 = vsyncadd [#allocation3], %s17
      %s19 = sshll.u32 [#allocation2], 4
      %s20 = int_to_ptr.vmem [resolvable:$true] %s19
      %25 = dma.hbm_to_vmem [thread:$0]  %s0, 512, %s20, [#allocation3], 128, 128, 8
    $region5: #{tpu_custom_call.1} parent=1 // pred_fallthru
      _
    // Predicated region
    $region6: #{tpu_custom_call.1} parent=1 // pred_check
      _
    $region7: #{tpu_custom_call.1} parent=1 // pred_check_branch
      %27 = sbr.rel (0) target = $region9
    $region8: #{tpu_custom_call.1} parent=1 // pred_region
      %s29 = ssub.s32 256, 256
      %30 = vsyncadd [#allocation6], %s29
      %s31 = sshll.u32 [#allocation5], 4
      %s32 = int_to_ptr.vmem [resolvable:$true] %s31
      %37 = dma.hbm_to_vmem [thread:$0]  %s1, 256, %s32, [#allocation6], 64, 64, 4
    $region9: #{tpu_custom_call.1} parent=1 // pred_fallthru
      _
    // Predicated region
    $region10: #{tpu_custom_call.1} parent=1 // pred_check
      _
    $region11: #{tpu_custom_call.1} parent=1 // pred_check_branch
      %39 = sbr.rel (0) target = $region13
    $region12: #{tpu_custom_call.1} parent=1 // pred_region
      %s41 = ssub.s32 128, 128
      %42 = vsyncadd [#allocation6], %s41
      %s44 = sshll.u32 [#allocation7], 4
      %s45 = int_to_ptr.vmem [resolvable:$true] %s44
      %47 = dma.hbm_to_vmem [thread:$0]  %s2, 128, %s45, [#allocation6]
    $region13: #{tpu_custom_call.1} parent=1 // pred_fallthru
      _
    // Predicated region
    $region14: #{tpu_custom_call.1} parent=1 // pred_check
      _
    $region15: #{tpu_custom_call.1} parent=1 // pred_check_branch
      %49 = sbr.rel (0) target = $region17
    $region16: #{tpu_custom_call.1} parent=1 // pred_region
      %s51 = ssub.s32 2304, 2304
      %52 = vsyncadd [#allocation9], %s51
      %s53 = sshll.u32 [#allocation8], 4
      %s54 = int_to_ptr.vmem [resolvable:$true] %s53
      %59 = dma.hbm_to_vmem [thread:$0]  %s3, 2304, %s54, [#allocation9], 64, 64, 4
    $region17: #{tpu_custom_call.1} parent=1 // pred_fallthru
      _
    // Predicated region
    $region18: #{tpu_custom_call.1} parent=1 // pred_check
      _
    $region19: #{tpu_custom_call.1} parent=1 // pred_check_branch
      %61 = sbr.rel (0) target = $region21
    $region20: #{tpu_custom_call.1} parent=1 // pred_region
      _
    $region21: #{tpu_custom_call.1} parent=1 // pred_fallthru
      _
    // Predicated region
    $region22: #{tpu_custom_call.1} parent=1 // pred_check
      _
    $region23: #{tpu_custom_call.1} parent=1 // pred_check_branch
      %63 = sbr.rel (0) target = $region25
    $region24: #{tpu_custom_call.1} parent=1 // pred_region
      %64 = dma.done [#allocation3], 512
    $region25: #{tpu_custom_call.1} parent=1 // pred_fallthru
      _
    // Predicated region
    $region26: #{tpu_custom_call.1} parent=1 // pred_check
      _
    $region27: #{tpu_custom_call.1} parent=1 // pred_check_branch
      %66 = sbr.rel (0) target = $region29
    $region28: #{tpu_custom_call.1} parent=1 // pred_region
      %67 = dma.done [#allocation6], 256
    $region29: #{tpu_custom_call.1} parent=1 // pred_fallthru
      _
    // Predicated region
    $region30: #{tpu_custom_call.1} parent=1 // pred_check
      _
    $region31: #{tpu_custom_call.1} parent=1 // pred_check_branch
      %69 = sbr.rel (0) target = $region33
    $region32: #{tpu_custom_call.1} parent=1 // pred_region
      %70 = dma.done [#allocation6], 128
    $region33: #{tpu_custom_call.1} parent=1 // pred_fallthru
      _
    // Predicated region
    $region34: #{tpu_custom_call.1} parent=1 // pred_check
      _
    $region35: #{tpu_custom_call.1} parent=1 // pred_check_branch
      %72 = sbr.rel (0) target = $region37
    $region36: #{tpu_custom_call.1} parent=1 // pred_region
      %73 = dma.done [#allocation9], 2304
    $region37: #{tpu_custom_call.1} parent=1 // pred_fallthru
      _
    %v75 = vld [vmem:[#allocation2] sm:$0xff]
    %v76 = vld [vmem:[#allocation2 + $0x8] sm:$0xff]
    %v77 = vld [vmem:[#allocation2 + $0x10] sm:$0xff]
    %v78 = vld [vmem:[#allocation2 + $0x18] sm:$0xff]
    %v79 = vld [vmem:[#allocation5] sm:$0xf]
    %v80 = vld [vmem:[#allocation5 + $0x4] sm:$0xf]
    %v81 = vld [vmem:[#allocation5 + $0x8] sm:$0xf]
    %v82 = vld [vmem:[#allocation5 + $0xc] sm:$0xf]
    %v83 = vld [vmem:[#allocation8] sm:$0xf]
    %v84 = vld [vmem:[#allocation8 + $0x4] sm:$0xf]
    %v85 = vld [vmem:[#allocation8 + $0x8] sm:$0xf]
    %v86 = vld [vmem:[#allocation8 + $0xc] sm:$0xf]
    %v87 = vld [vmem:[#allocation8 + $0x10] sm:$0xf]
    %v88 = vld [vmem:[#allocation8 + $0x14] sm:$0xf]
    %v89 = vld [vmem:[#allocation8 + $0x18] sm:$0xf]
    %v90 = vld [vmem:[#allocation8 + $0x1c] sm:$0xf]
    %v95 = vunpack.c.l.b16 %v79
    %v96 = vunpack.c.l.b16 %v80
    %v97 = vunpack.c.l.b16 %v81
    %v98 = vunpack.c.l.b16 %v82
    %v99 = vpack.c.b16 %v96, %v95
    %v100 = vpack.c.b16 %v98, %v97
    %v109 = vunpack.c.l.b16 %v83
    %v110 = vunpack.c.l.b16 %v84
    %v111 = vunpack.c.l.b16 %v85
    %v112 = vunpack.c.l.b16 %v86
    %v113 = vunpack.c.l.b16 %v87
    %v114 = vunpack.c.l.b16 %v88
    %v115 = vunpack.c.l.b16 %v89
    %v116 = vunpack.c.l.b16 %v90
    %v117 = vpack.c.b16 %v110, %v109
    %v118 = vpack.c.b16 %v112, %v111
    %v119 = vpack.c.b16 %v114, %v113
    %v120 = vpack.c.b16 %v116, %v115
    %vm125 = vcmask 523264
    %v127 = vsel %vm125, %v99, 0
    %v130 = vsel %vm125, %v100, 0
    %132 = vmatprep.subr.bf16.mxu0 0
    %133 = vmatpush1.bf16.msra.mxu0 %v117
    %134 = vmatprep.subr.bf16.mxu0 0
    %135 = vmatpush1.bf16.msra.mxu0 %v118
    %136 = vmatprep.subr.bf16.mxu0 0
    %137 = vmatpush1.bf16.msra.mxu0 %v119
    %138 = vmatprep.subr.bf16.mxu0 0
    %139 = vmatpush1.bf16.msra.mxu0 %v120
    %140 = vmatprep.subr.bf16.mxu0 0
    %141 = vmatpush1.bf16.msra.mxu0 0
    %142 = vmatprep.subr.bf16.mxu0 0
    %143 = vmatpush1.bf16.msra.mxu0 0
    %144 = vmatprep.subr.bf16.mxu0 0
    %145 = vmatpush1.bf16.msra.mxu0 0
    %146 = vmatprep.subr.bf16.mxu0 0
    %147 = vmatpush1.bf16.msra.mxu0 0
    %148 = vmatprep.subr.bf16.mxu0 0
    %149 = vmatpush1.bf16.msra.mxu0 0
    %150 = vmatprep.subr.bf16.mxu0 0
    %151 = vmatpush1.bf16.msra.mxu0 0
    %152 = vmatprep.subr.bf16.mxu0 0
    %153 = vmatpush1.bf16.msra.mxu0 0
    %154 = vmatprep.subr.bf16.mxu0 0
    %155 = vmatpush1.bf16.msra.mxu0 0
    %156 = vmatprep.subr.bf16.mxu0 0
    %157 = vmatpush1.bf16.msra.mxu0 0
    %158 = vmatprep.subr.bf16.mxu0 0
    %159 = vmatpush1.bf16.msra.mxu0 0
    %160 = vmatprep.subr.bf16.mxu0 0
    %161 = vmatpush1.bf16.msra.mxu0 0
    %162 = vmatprep.subr.bf16.mxu0 0
    %163 = vmatpush1.bf16.msra.mxu0 0
    %164 = vmatprep.mubr.bf16.mxu0 0
    %165 = vmatmul.mubr.bf16.gmra.mrb[0].mxu0 %v127
    %v166 = vpop.f32.mrb[0].mxu0
    %v167 = vadd.f32 0.0, %v166
    %v168 = vpop.f32.mrb[0].mxu0
    %v169 = vpop.f32.mrb[0].mxu0
    %v170 = vadd.f32 0.0, %v169
    %v171 = vpop.f32.mrb[0].mxu0
    %172 = vmatprep.mubr.bf16.mxu0 0
    %173 = vmatmul.mubr.bf16.gmra.mrb[0].mxu0 %v130
    %v174 = vpop.f32.mrb[0].mxu0
    %v175 = vadd.f32 0.0, %v174
    %v176 = vpop.f32.mrb[0].mxu0
    %v177 = vpop.f32.mrb[0].mxu0
    %v178 = vadd.f32 0.0, %v177
    %v179 = vpop.f32.mrb[0].mxu0
    %180 = vdwg.mxu0
    %185 = vrot.lane.b32.xlu0 %v167, 64
    %v186 = vpop.permute.xlu0 %185
    %187 = vrot.lane.b32.xlu0 %v170, 64
    %v188 = vpop.permute.xlu0 %187
    %189 = vrot.lane.b32.xlu0 %v175, 64
    %v190 = vpop.permute.xlu0 %189
    %191 = vrot.lane.b32.xlu0 %v178, 64
    %v192 = vpop.permute.xlu0 %191
    %vm197 = vcmask 261120
    %v199 = vsel %vm197, %v75, 0
    %v202 = vsel %vm197, %v76, 0
    %v205 = vsel %vm197, %v77, 0
    %v208 = vsel %vm197, %v78, 0
    %210 = vmatprep.subr.mxu0 0.0
    %211 = vmatpush1.msra.mxu0 %v186
    %212 = vmatprep.subr.mxu0 0.0
    %213 = vmatpush1.msra.mxu0 %v188
    %214 = vmatprep.subr.mxu0 0.0
    %215 = vmatpush1.msra.mxu0 %v190
    %216 = vmatprep.subr.mxu0 0.0
    %217 = vmatpush1.msra.mxu0 %v192
    %218 = vmatprep.subr.mxu0 0.0
    %219 = vmatpush1.msra.mxu0 0.0
    %220 = vmatprep.subr.mxu0 0.0
    %221 = vmatpush1.msra.mxu0 0.0
    %222 = vmatprep.subr.mxu0 0.0
    %223 = vmatpush1.msra.mxu0 0.0
    %224 = vmatprep.subr.mxu0 0.0
    %225 = vmatpush1.msra.mxu0 0.0
    %226 = vmatprep.subr.mxu0 0.0
    %227 = vmatpush1.msra.mxu0 0.0
    %228 = vmatprep.subr.mxu0 0.0
    %229 = vmatpush1.msra.mxu0 0.0
    %230 = vmatprep.subr.mxu0 0.0
    %231 = vmatpush1.msra.mxu0 0.0
    %232 = vmatprep.subr.mxu0 0.0
    %233 = vmatpush1.msra.mxu0 0.0
    %234 = vmatprep.subr.mxu0 0.0
    %235 = vmatpush1.msra.mxu0 0.0
    %236 = vmatprep.subr.mxu0 0.0
    %237 = vmatpush1.msra.mxu0 0.0
    %238 = vmatprep.subr.mxu0 0.0
    %239 = vmatpush1.msra.mxu0 0.0
    %240 = vmatprep.subr.mxu0 0.0
    %241 = vmatpush1.msra.mxu0 0.0
    %242 = vmatprep.subr.mxu0 0.0
    %243 = vmatpush1.msra.mxu0 0.0
    %244 = vmatprep.subr.mxu0 0.0
    %245 = vmatpush1.msra.mxu0 0.0
    %246 = vmatprep.subr.mxu0 0.0
    %247 = vmatpush1.msra.mxu0 0.0
    %248 = vmatprep.subr.mxu0 0.0
    %249 = vmatpush1.msra.mxu0 0.0
    %250 = vmatprep.subr.mxu0 0.0
    %251 = vmatpush1.msra.mxu0 0.0
    %252 = vmatprep.subr.mxu0 0.0
    %253 = vmatpush1.msra.mxu0 0.0
    %254 = vmatprep.subr.mxu0 0.0
    %255 = vmatpush1.msra.mxu0 0.0
    %256 = vmatprep.subr.mxu0 0.0
    %257 = vmatpush1.msra.mxu0 0.0
    %258 = vmatprep.subr.mxu0 0.0
    %259 = vmatpush1.msra.mxu0 0.0
    %260 = vmatprep.subr.mxu0 0.0
    %261 = vmatpush1.msra.mxu0 0.0
    %262 = vmatprep.subr.mxu0 0.0
    %263 = vmatpush1.msra.mxu0 0.0
    %264 = vmatprep.subr.mxu0 0.0
    %265 = vmatpush1.msra.mxu0 0.0
    %266 = vmatprep.subr.mxu0 0.0
    %267 = vmatpush1.msra.mxu0 0.0
    %268 = vmatprep.subr.mxu0 0.0
    %269 = vmatpush1.msra.mxu0 0.0
    %270 = vmatprep.subr.mxu0 0.0
    %271 = vmatpush1.msra.mxu0 0.0
    %272 = vmatprep.subr.mxu0 0.0
    %273 = vmatpush1.msra.mxu0 0.0
    %274 = vmatprep.mubr.f32.mxu0 0.0
    %275 = vmatmul.mubr.f32.gmra.mrb[0].mxu0 %v199
    %v276 = vpop.f32.mrb[0].mxu0
    %v277 = vadd.f32 0.0, %v276
    %v278 = vpop.f32.mrb[0].mxu0
    %279 = vmatprep.mubr.f32.mxu0 0.0
    %280 = vmatmul.mubr.f32.gmra.mrb[0].mxu0 %v202
    %v281 = vpop.f32.mrb[0].mxu0
    %v282 = vadd.f32 0.0, %v281
    %v283 = vpop.f32.mrb[0].mxu0
    %284 = vmatprep.mubr.f32.mxu0 0.0
    %285 = vmatmul.mubr.f32.gmra.mrb[0].mxu0 %v205
    %v286 = vpop.f32.mrb[0].mxu0
    %v287 = vadd.f32 0.0, %v286
    %v288 = vpop.f32.mrb[0].mxu0
    %289 = vmatprep.mubr.f32.mxu0 0.0
    %290 = vmatmul.mubr.f32.gmra.mrb[0].mxu0 %v208
    %v291 = vpop.f32.mrb[0].mxu0
    %v292 = vadd.f32 0.0, %v291
    %v293 = vpop.f32.mrb[0].mxu0
    %294 = vdwg.mxu0
    %v295 = vadd.f32 %v167, %v277
    %v296 = vadd.f32 %v170, %v282
    %v297 = vadd.f32 %v175, %v287
    %v298 = vadd.f32 %v178, %v292
    %v299 = vld [vmem:[%s4] sm:$0x1]
    %v300 = vlaneseq
    %v301 = vshrl.u32 %v300, 7
    %v302 = vsub.s32 0, %v301
    %v303 = vrot.slane %v299, %v302
    %v304 = vadd.f32 %v295, %v303
    %v305 = vadd.f32 %v296, %v303
    %v306 = vadd.f32 %v297, %v303
    %v307 = vadd.f32 %v298, %v303
    %v308 = vmax.f32 %v304, 0.0
    %v309 = vmax.f32 %v305, 0.0
    %v310 = vmax.f32 %v306, 0.0
    %v311 = vmax.f32 %v307, 0.0
    %v312 = vpack.c.bf16 %v309, %v308
    %v313 = vpack.c.bf16 %v311, %v310
    %v314 = vld [vmem:[#allocation8 + $0x20] sm:$0xf]
    %v315 = vld [vmem:[#allocation8 + $0x24] sm:$0xf]
    %v316 = vld [vmem:[#allocation8 + $0x28] sm:$0xf]
    %v317 = vld [vmem:[#allocation8 + $0x2c] sm:$0xf]
    %v318 = vld [vmem:[#allocation8 + $0x30] sm:$0xf]
    %v319 = vld [vmem:[#allocation8 + $0x34] sm:$0xf]
    %v320 = vld [vmem:[#allocation8 + $0x38] sm:$0xf]
    %v321 = vld [vmem:[#allocation8 + $0x3c] sm:$0xf]
    %v330 = vunpack.c.l.b16 %v314
    %v331 = vunpack.c.l.b16 %v315
    %v332 = vunpack.c.l.b16 %v316
    %v333 = vunpack.c.l.b16 %v317
    %v334 = vunpack.c.l.b16 %v318
    %v335 = vunpack.c.l.b16 %v319
    %v336 = vunpack.c.l.b16 %v320
    %v337 = vunpack.c.l.b16 %v321
    %v338 = vpack.c.b16 %v331, %v330
    %v339 = vpack.c.b16 %v333, %v332
    %v340 = vpack.c.b16 %v335, %v334
    %v341 = vpack.c.b16 %v337, %v336
    %v347 = vsel %vm125, %v312, 0
    %v350 = vsel %vm125, %v313, 0
    %352 = vmatprep.subr.bf16.mxu0 0
    %353 = vmatpush1.bf16.msra.mxu0 %v338
    %354 = vmatprep.subr.bf16.mxu0 0
    %355 = vmatpush1.bf16.msra.mxu0 %v339
    %356 = vmatprep.subr.bf16.mxu0 0
    %357 = vmatpush1.bf16.msra.mxu0 %v340
    %358 = vmatprep.subr.bf16.mxu0 0
    %359 = vmatpush1.bf16.msra.mxu0 %v341
    %360 = vmatprep.subr.bf16.mxu0 0
    %361 = vmatpush1.bf16.msra.mxu0 0
    %362 = vmatprep.subr.bf16.mxu0 0
    %363 = vmatpush1.bf16.msra.mxu0 0
    %364 = vmatprep.subr.bf16.mxu0 0
    %365 = vmatpush1.bf16.msra.mxu0 0
    %366 = vmatprep.subr.bf16.mxu0 0
    %367 = vmatpush1.bf16.msra.mxu0 0
    %368 = vmatprep.subr.bf16.mxu0 0
    %369 = vmatpush1.bf16.msra.mxu0 0
    %370 = vmatprep.subr.bf16.mxu0 0
    %371 = vmatpush1.bf16.msra.mxu0 0
    %372 = vmatprep.subr.bf16.mxu0 0
    %373 = vmatpush1.bf16.msra.mxu0 0
    %374 = vmatprep.subr.bf16.mxu0 0
    %375 = vmatpush1.bf16.msra.mxu0 0
    %376 = vmatprep.subr.bf16.mxu0 0
    %377 = vmatpush1.bf16.msra.mxu0 0
    %378 = vmatprep.subr.bf16.mxu0 0
    %379 = vmatpush1.bf16.msra.mxu0 0
    %380 = vmatprep.subr.bf16.mxu0 0
    %381 = vmatpush1.bf16.msra.mxu0 0
    %382 = vmatprep.subr.bf16.mxu0 0
    %383 = vmatpush1.bf16.msra.mxu0 0
    %384 = vmatprep.mubr.bf16.mxu0 0
    %385 = vmatmul.mubr.bf16.gmra.mrb[0].mxu0 %v347
    %v386 = vpop.f32.mrb[0].mxu0
    %v387 = vadd.f32 0.0, %v386
    %v388 = vpop.f32.mrb[0].mxu0
    %v389 = vpop.f32.mrb[0].mxu0
    %v390 = vadd.f32 0.0, %v389
    %v391 = vpop.f32.mrb[0].mxu0
    %392 = vmatprep.mubr.bf16.mxu0 0
    %393 = vmatmul.mubr.bf16.gmra.mrb[0].mxu0 %v350
    %v394 = vpop.f32.mrb[0].mxu0
    %v395 = vadd.f32 0.0, %v394
    %v396 = vpop.f32.mrb[0].mxu0
    %v397 = vpop.f32.mrb[0].mxu0
    %v398 = vadd.f32 0.0, %v397
    %v399 = vpop.f32.mrb[0].mxu0
    %400 = vdwg.mxu0
    %405 = vrot.lane.b32.xlu0 %v387, 96
    %v406 = vpop.permute.xlu0 %405
    %407 = vrot.lane.b32.xlu0 %v390, 96
    %v408 = vpop.permute.xlu0 %407
    %409 = vrot.lane.b32.xlu0 %v395, 96
    %v410 = vpop.permute.xlu0 %409
    %411 = vrot.lane.b32.xlu0 %v398, 96
    %v412 = vpop.permute.xlu0 %411
    %417 = vmatprep.subr.mxu0 0.0
    %418 = vmatpush1.msra.mxu0 %v406
    %419 = vmatprep.subr.mxu0 0.0
    %420 = vmatpush1.msra.mxu0 %v408
    %421 = vmatprep.subr.mxu0 0.0
    %422 = vmatpush1.msra.mxu0 %v410
    %423 = vmatprep.subr.mxu0 0.0
    %424 = vmatpush1.msra.mxu0 %v412
    %425 = vmatprep.subr.mxu0 0.0
    %426 = vmatpush1.msra.mxu0 0.0
    %427 = vmatprep.subr.mxu0 0.0
    %428 = vmatpush1.msra.mxu0 0.0
    %429 = vmatprep.subr.mxu0 0.0
    %430 = vmatpush1.msra.mxu0 0.0
    %431 = vmatprep.subr.mxu0 0.0
    %432 = vmatpush1.msra.mxu0 0.0
    %433 = vmatprep.subr.mxu0 0.0
    %434 = vmatpush1.msra.mxu0 0.0
    %435 = vmatprep.subr.mxu0 0.0
    %436 = vmatpush1.msra.mxu0 0.0
    %437 = vmatprep.subr.mxu0 0.0
    %438 = vmatpush1.msra.mxu0 0.0
    %439 = vmatprep.subr.mxu0 0.0
    %440 = vmatpush1.msra.mxu0 0.0
    %441 = vmatprep.subr.mxu0 0.0
    %442 = vmatpush1.msra.mxu0 0.0
    %443 = vmatprep.subr.mxu0 0.0
    %444 = vmatpush1.msra.mxu0 0.0
    %445 = vmatprep.subr.mxu0 0.0
    %446 = vmatpush1.msra.mxu0 0.0
    %447 = vmatprep.subr.mxu0 0.0
    %448 = vmatpush1.msra.mxu0 0.0
    %449 = vmatprep.subr.mxu0 0.0
    %450 = vmatpush1.msra.mxu0 0.0
    %451 = vmatprep.subr.mxu0 0.0
    %452 = vmatpush1.msra.mxu0 0.0
    %453 = vmatprep.subr.mxu0 0.0
    %454 = vmatpush1.msra.mxu0 0.0
    %455 = vmatprep.subr.mxu0 0.0
    %456 = vmatpush1.msra.mxu0 0.0
    %457 = vmatprep.subr.mxu0 0.0
    %458 = vmatpush1.msra.mxu0 0.0
    %459 = vmatprep.subr.mxu0 0.0
    %460 = vmatpush1.msra.mxu0 0.0
    %461 = vmatprep.subr.mxu0 0.0
    %462 = vmatpush1.msra.mxu0 0.0
    %463 = vmatprep.subr.mxu0 0.0
    %464 = vmatpush1.msra.mxu0 0.0
    %465 = vmatprep.subr.mxu0 0.0
    %466 = vmatpush1.msra.mxu0 0.0
    %467 = vmatprep.subr.mxu0 0.0
    %468 = vmatpush1.msra.mxu0 0.0
    %469 = vmatprep.subr.mxu0 0.0
    %470 = vmatpush1.msra.mxu0 0.0
    %471 = vmatprep.subr.mxu0 0.0
    %472 = vmatpush1.msra.mxu0 0.0
    %473 = vmatprep.subr.mxu0 0.0
    %474 = vmatpush1.msra.mxu0 0.0
    %475 = vmatprep.subr.mxu0 0.0
    %476 = vmatpush1.msra.mxu0 0.0
    %477 = vmatprep.subr.mxu0 0.0
    %478 = vmatpush1.msra.mxu0 0.0
    %479 = vmatprep.subr.mxu0 0.0
    %480 = vmatpush1.msra.mxu0 0.0
    %481 = vmatprep.mubr.f32.mxu0 0.0
    %482 = vmatmul.mubr.f32.gmra.mrb[0].mxu0 %v199
    %v483 = vpop.f32.mrb[0].mxu0
    %v484 = vadd.f32 0.0, %v483
    %v485 = vpop.f32.mrb[0].mxu0
    %486 = vmatprep.mubr.f32.mxu0 0.0
    %487 = vmatmul.mubr.f32.gmra.mrb[0].mxu0 %v202
    %v488 = vpop.f32.mrb[0].mxu0
    %v489 = vadd.f32 0.0, %v488
    %v490 = vpop.f32.mrb[0].mxu0
    %491 = vmatprep.mubr.f32.mxu0 0.0
    %492 = vmatmul.mubr.f32.gmra.mrb[0].mxu0 %v205
    %v493 = vpop.f32.mrb[0].mxu0
    %v494 = vadd.f32 0.0, %v493
    %v495 = vpop.f32.mrb[0].mxu0
    %496 = vmatprep.mubr.f32.mxu0 0.0
    %497 = vmatmul.mubr.f32.gmra.mrb[0].mxu0 %v208
    %v498 = vpop.f32.mrb[0].mxu0
    %v499 = vadd.f32 0.0, %v498
    %v500 = vpop.f32.mrb[0].mxu0
    %501 = vdwg.mxu0
    %v502 = vadd.f32 %v387, %v484
    %v503 = vadd.f32 %v390, %v489
    %v504 = vadd.f32 %v395, %v494
    %v505 = vadd.f32 %v398, %v499
    %v506 = vld [vmem:[%s4 + $0x1] sm:$0x1]
    %v507 = vlaneseq
    %v508 = vshrl.u32 %v507, 7
    %v509 = vsub.s32 0, %v508
    %v510 = vrot.slane %v506, %v509
    %v511 = vadd.f32 %v502, %v510
    %v512 = vadd.f32 %v503, %v510
    %v513 = vadd.f32 %v504, %v510
    %v514 = vadd.f32 %v505, %v510
    %v515 = vld [vmem:[#allocation7] sm:$0xff]
    %v517 = vsel %vm197, %v515, 0
    %519 = vmatprep.subr.mxu0 0.0
    %520 = vmatpush1.msra.mxu0 %v511
    %521 = vmatprep.subr.mxu0 0.0
    %522 = vmatpush1.msra.mxu0 %v512
    %523 = vmatprep.subr.mxu0 0.0
    %524 = vmatpush1.msra.mxu0 %v513
    %525 = vmatprep.subr.mxu0 0.0
    %526 = vmatpush1.msra.mxu0 %v514
    %527 = vmatprep.subr.mxu0 0.0
    %528 = vmatpush1.msra.mxu0 0.0
    %529 = vmatprep.subr.mxu0 0.0
    %530 = vmatpush1.msra.mxu0 0.0
    %531 = vmatprep.subr.mxu0 0.0
    %532 = vmatpush1.msra.mxu0 0.0
    %533 = vmatprep.subr.mxu0 0.0
    %534 = vmatpush1.msra.mxu0 0.0
    %535 = vmatprep.subr.mxu0 0.0
    %536 = vmatpush1.msra.mxu0 0.0
    %537 = vmatprep.subr.mxu0 0.0
    %538 = vmatpush1.msra.mxu0 0.0
    %539 = vmatprep.subr.mxu0 0.0
    %540 = vmatpush1.msra.mxu0 0.0
    %541 = vmatprep.subr.mxu0 0.0
    %542 = vmatpush1.msra.mxu0 0.0
    %543 = vmatprep.subr.mxu0 0.0
    %544 = vmatpush1.msra.mxu0 0.0
    %545 = vmatprep.subr.mxu0 0.0
    %546 = vmatpush1.msra.mxu0 0.0
    %547 = vmatprep.subr.mxu0 0.0
    %548 = vmatpush1.msra.mxu0 0.0
    %549 = vmatprep.subr.mxu0 0.0
    %550 = vmatpush1.msra.mxu0 0.0
    %551 = vmatprep.subr.mxu0 0.0
    %552 = vmatpush1.msra.mxu0 0.0
    %553 = vmatprep.subr.mxu0 0.0
    %554 = vmatpush1.msra.mxu0 0.0
    %555 = vmatprep.subr.mxu0 0.0
    %556 = vmatpush1.msra.mxu0 0.0
    %557 = vmatprep.subr.mxu0 0.0
    %558 = vmatpush1.msra.mxu0 0.0
    %559 = vmatprep.subr.mxu0 0.0
    %560 = vmatpush1.msra.mxu0 0.0
    %561 = vmatprep.subr.mxu0 0.0
    %562 = vmatpush1.msra.mxu0 0.0
    %563 = vmatprep.subr.mxu0 0.0
    %564 = vmatpush1.msra.mxu0 0.0
    %565 = vmatprep.subr.mxu0 0.0
    %566 = vmatpush1.msra.mxu0 0.0
    %567 = vmatprep.subr.mxu0 0.0
    %568 = vmatpush1.msra.mxu0 0.0
    %569 = vmatprep.subr.mxu0 0.0
    %570 = vmatpush1.msra.mxu0 0.0
    %571 = vmatprep.subr.mxu0 0.0
    %572 = vmatpush1.msra.mxu0 0.0
    %573 = vmatprep.subr.mxu0 0.0
    %574 = vmatpush1.msra.mxu0 0.0
    %575 = vmatprep.subr.mxu0 0.0
    %576 = vmatpush1.msra.mxu0 0.0
    %577 = vmatprep.subr.mxu0 0.0
    %578 = vmatpush1.msra.mxu0 0.0
    %579 = vmatprep.subr.mxu0 0.0
    %580 = vmatpush1.msra.mxu0 0.0
    %581 = vmatprep.subr.mxu0 0.0
    %582 = vmatpush1.msra.mxu0 0.0
    %583 = vmatprep.mubr.f32.mxu0 0.0
    %584 = vmatmul.mubr.f32.gmra.mrb[0].mxu0 %v517
    %v585 = vpop.f32.mrb[0].mxu0
    %v586 = vadd.f32 0.0, %v585
    %v587 = vpop.f32.mrb[0].mxu0
    %588 = vdwg.mxu0
    %v589 = vld [vmem:[#allocation8 + $0x40] sm:$0xf]
    %v590 = vld [vmem:[#allocation8 + $0x44] sm:$0xf]
    %v591 = vld [vmem:[#allocation8 + $0x48] sm:$0xf]
    %v592 = vld [vmem:[#allocation8 + $0x4c] sm:$0xf]
    %v593 = vpack.c.bf16 %v512, %v511
    %v594 = vpack.c.bf16 %v514, %v513
    %v595 = vpack.c.bf16 %v586, %v586
    %v596 = vld [vmem:[%s4 + $0x2] sm:$0x1]
    %v597 = vlaneseq
    %v598 = vshrl.u32 %v597, 7
    %v599 = vsub.s32 0, %v598
    %v600 = vrot.slane %v596, %v599
    %v605 = vunpack.c.l.b16 %v589
    %v606 = vunpack.c.l.b16 %v590
    %v607 = vunpack.c.l.b16 %v591
    %v608 = vunpack.c.l.b16 %v592
    %v609 = vpack.c.b16 %v606, %v605
    %v610 = vpack.c.b16 %v608, %v607
    %v614 = vsel %vm197, %v593, 0
    %v617 = vsel %vm197, %v594, 0
    %v620 = vsel %vm197, %v595, 0
    %622 = vmatprep.subr.bf16.mxu0 0
    %623 = vmatpush1.bf16.msra.mxu0 %v609
    %624 = vmatprep.subr.bf16.mxu0 0
    %625 = vmatpush1.bf16.msra.mxu0 %v610
    %626 = vmatprep.subr.bf16.mxu0 0
    %627 = vmatpush1.bf16.msra.mxu0 0
    %628 = vmatprep.subr.bf16.mxu0 0
    %629 = vmatpush1.bf16.msra.mxu0 0
    %630 = vmatprep.subr.bf16.mxu0 0
    %631 = vmatpush1.bf16.msra.mxu0 0
    %632 = vmatprep.subr.bf16.mxu0 0
    %633 = vmatpush1.bf16.msra.mxu0 0
    %634 = vmatprep.subr.bf16.mxu0 0
    %635 = vmatpush1.bf16.msra.mxu0 0
    %636 = vmatprep.subr.bf16.mxu0 0
    %637 = vmatpush1.bf16.msra.mxu0 0
    %638 = vmatprep.subr.bf16.mxu0 0
    %639 = vmatpush1.bf16.msra.mxu0 0
    %640 = vmatprep.subr.bf16.mxu0 0
    %641 = vmatpush1.bf16.msra.mxu0 0
    %642 = vmatprep.subr.bf16.mxu0 0
    %643 = vmatpush1.bf16.msra.mxu0 0
    %644 = vmatprep.subr.bf16.mxu0 0
    %645 = vmatpush1.bf16.msra.mxu0 0
    %646 = vmatprep.subr.bf16.mxu0 0
    %647 = vmatpush1.bf16.msra.mxu0 0
    %648 = vmatprep.subr.bf16.mxu0 0
    %649 = vmatpush1.bf16.msra.mxu0 0
    %650 = vmatprep.subr.bf16.mxu0 0
    %651 = vmatpush1.bf16.msra.mxu0 0
    %652 = vmatprep.subr.bf16.mxu0 0
    %653 = vmatpush1.bf16.msra.mxu0 0
    %654 = vmatprep.mubr.bf16.mxu0 0
    %655 = vmatmul.mubr.bf16.gmra.mrb[0].mxu0 %v614
    %v656 = vpop.f32.mrb[0].mxu0
    %v657 = vadd.f32 %v600, %v656
    %v658 = vpop.f32.mrb[0].mxu0
    %v659 = vpop.f32.mrb[0].mxu0
    %v660 = vadd.f32 %v600, %v659
    %v661 = vpop.f32.mrb[0].mxu0
    %662 = vmatprep.mubr.bf16.mxu0 0
    %663 = vmatmul.mubr.bf16.gmra.mrb[0].mxu0 %v617
    %v664 = vpop.f32.mrb[0].mxu0
    %v665 = vadd.f32 %v600, %v664
    %v666 = vpop.f32.mrb[0].mxu0
    %v667 = vpop.f32.mrb[0].mxu0
    %v668 = vadd.f32 %v600, %v667
    %v669 = vpop.f32.mrb[0].mxu0
    %670 = vmatprep.mubr.bf16.mxu0 0
    %671 = vmatmul.mubr.bf16.gmra.mrb[0].mxu0 %v620
    %v672 = vpop.f32.mrb[0].mxu0
    %v673 = vadd.f32 %v600, %v672
    %v674 = vpop.f32.mrb[0].mxu0
    %v675 = vpop.f32.mrb[0].mxu0
    %v676 = vpop.f32.mrb[0].mxu0
    %677 = vdwg.mxu0
    %v678 = vmax.f32 %v657, 0.0
    %v679 = vmax.f32 %v660, 0.0
    %v680 = vmax.f32 %v665, 0.0
    %v681 = vmax.f32 %v668, 0.0
    %v682 = vmax.f32 %v673, 0.0
    %v683 = vld [vmem:[#allocation8 + $0x50] sm:$0xf]
    %v684 = vld [vmem:[#allocation8 + $0x54] sm:$0xf]
    %v685 = vld [vmem:[#allocation8 + $0x58] sm:$0xf]
    %v686 = vld [vmem:[#allocation8 + $0x5c] sm:$0xf]
    %v687 = vld [vmem:[#allocation8 + $0x60] sm:$0xf]
    %v688 = vld [vmem:[#allocation8 + $0x64] sm:$0xf]
    %v689 = vld [vmem:[#allocation8 + $0x68] sm:$0xf]
    %v690 = vld [vmem:[#allocation8 + $0x6c] sm:$0xf]
    %v691 = vld [vmem:[#allocation8 + $0x70] sm:$0xf]
    %v692 = vld [vmem:[#allocation8 + $0x74] sm:$0xf]
    %v693 = vld [vmem:[#allocation8 + $0x78] sm:$0xf]
    %v694 = vld [vmem:[#allocation8 + $0x7c] sm:$0xf]
    %v695 = vld [vmem:[#allocation8 + $0x80] sm:$0xf]
    %v696 = vld [vmem:[#allocation8 + $0x84] sm:$0xf]
    %v697 = vld [vmem:[#allocation8 + $0x88] sm:$0xf]
    %v698 = vld [vmem:[#allocation8 + $0x8c] sm:$0xf]
    %v699 = vpack.c.bf16 %v679, %v678
    %v700 = vpack.c.bf16 %v681, %v680
    %v701 = vpack.c.bf16 %v682, %v682
    %v718 = vunpack.c.l.b16 %v683
    %v719 = vunpack.c.l.b16 %v684
    %v720 = vunpack.c.l.b16 %v685
    %v721 = vunpack.c.l.b16 %v686
    %v722 = vunpack.c.l.b16 %v687
    %v723 = vunpack.c.l.b16 %v688
    %v724 = vunpack.c.l.b16 %v689
    %v725 = vunpack.c.l.b16 %v690
    %v726 = vunpack.c.l.b16 %v691
    %v727 = vunpack.c.l.b16 %v692
    %v728 = vunpack.c.l.b16 %v693
    %v729 = vunpack.c.l.b16 %v694
    %v730 = vunpack.c.l.b16 %v695
    %v731 = vunpack.c.l.b16 %v696
    %v732 = vunpack.c.l.b16 %v697
    %v733 = vunpack.c.l.b16 %v698
    %v734 = vpack.c.b16 %v719, %v718
    %v735 = vpack.c.b16 %v721, %v720
    %v736 = vpack.c.b16 %v723, %v722
    %v737 = vpack.c.b16 %v725, %v724
    %v738 = vpack.c.b16 %v727, %v726
    %v739 = vpack.c.b16 %v729, %v728
    %v740 = vpack.c.b16 %v731, %v730
    %v741 = vpack.c.b16 %v733, %v732
    %750 = vmatprep.subr.bf16.mxu0 0
    %751 = vmatpush1.bf16.msra.mxu0 %v734
    %752 = vmatprep.subr.bf16.mxu0 0
    %753 = vmatpush1.bf16.msra.mxu0 %v735
    %754 = vmatprep.subr.bf16.mxu0 0
    %755 = vmatpush1.bf16.msra.mxu0 %v736
    %756 = vmatprep.subr.bf16.mxu0 0
    %757 = vmatpush1.bf16.msra.mxu0 %v737
    %758 = vmatprep.subr.bf16.mxu0 0
    %759 = vmatpush1.bf16.msra.mxu0 %v738
    %760 = vmatprep.subr.bf16.mxu0 0
    %761 = vmatpush1.bf16.msra.mxu0 %v739
    %762 = vmatprep.subr.bf16.mxu0 0
    %763 = vmatpush1.bf16.msra.mxu0 %v740
    %764 = vmatprep.subr.bf16.mxu0 0
    %765 = vmatpush1.bf16.msra.mxu0 %v741
    %766 = vmatprep.subr.bf16.mxu0 0
    %767 = vmatpush1.bf16.msra.mxu0 0
    %768 = vmatprep.subr.bf16.mxu0 0
    %769 = vmatpush1.bf16.msra.mxu0 0
    %770 = vmatprep.subr.bf16.mxu0 0
    %771 = vmatpush1.bf16.msra.mxu0 0
    %772 = vmatprep.subr.bf16.mxu0 0
    %773 = vmatpush1.bf16.msra.mxu0 0
    %774 = vmatprep.subr.bf16.mxu0 0
    %775 = vmatpush1.bf16.msra.mxu0 0
    %776 = vmatprep.subr.bf16.mxu0 0
    %777 = vmatpush1.bf16.msra.mxu0 0
    %778 = vmatprep.subr.bf16.mxu0 0
    %779 = vmatpush1.bf16.msra.mxu0 0
    %780 = vmatprep.subr.bf16.mxu0 0
    %781 = vmatpush1.bf16.msra.mxu0 0
    %782 = vmatprep.mubr.bf16.mxu0 0
    %783 = vmatmul.mubr.bf16.gmra.mrb[0].mxu0 %v699
    %v784 = vpop.f32.mrb[0].mxu0
    %v785 = vadd.f32 0.0, %v784
    %v786 = vpop.f32.mrb[0].mxu0
    %v787 = vpop.f32.mrb[0].mxu0
    %v788 = vadd.f32 0.0, %v787
    %v789 = vpop.f32.mrb[0].mxu0
    %790 = vmatprep.mubr.bf16.mxu0 0
    %791 = vmatmul.mubr.bf16.gmra.mrb[0].mxu0 %v700
    %v792 = vpop.f32.mrb[0].mxu0
    %v793 = vadd.f32 0.0, %v792
    %v794 = vpop.f32.mrb[0].mxu0
    %v795 = vpop.f32.mrb[0].mxu0
    %v796 = vadd.f32 0.0, %v795
    %v797 = vpop.f32.mrb[0].mxu0
    %798 = vmatprep.mubr.bf16.mxu0 0
    %799 = vmatmul.mubr.bf16.gmra.mrb[0].mxu0 %v701
    %v800 = vpop.f32.mrb[0].mxu0
    %v801 = vadd.f32 0.0, %v800
    %v802 = vpop.f32.mrb[0].mxu0
    %v803 = vpop.f32.mrb[0].mxu0
    %v804 = vpop.f32.mrb[0].mxu0
    %805 = vdwg.mxu0
    %v806 = vld [vmem:[%s4 + $0x3] sm:$0x1]
    %v807 = vlaneseq
    %v808 = vshrl.u32 %v807, 7
    %v809 = vsub.s32 0, %v808
    %v810 = vrot.slane %v806, %v809
    %v811 = vadd.f32 %v785, %v810
    %v812 = vadd.f32 %v788, %v810
    %v813 = vadd.f32 %v793, %v810
    %v814 = vadd.f32 %v796, %v810
    %v815 = vadd.f32 %v801, %v810
    %821 = vrot.lane.b32.xlu0 %v811, 32
    %v822 = vpop.permute.xlu0 %821
    %823 = vrot.lane.b32.xlu0 %v812, 32
    %v824 = vpop.permute.xlu0 %823
    %825 = vrot.lane.b32.xlu0 %v813, 32
    %v826 = vpop.permute.xlu0 %825
    %827 = vrot.lane.b32.xlu0 %v814, 32
    %v828 = vpop.permute.xlu0 %827
    %829 = vrot.lane.b32.xlu0 %v815, 32
    %v830 = vpop.permute.xlu0 %829
    %v836 = vsel %vm197, %v511, %v822
    %v837 = vsel %vm197, %v512, %v824
    %v838 = vsel %vm197, %v513, %v826
    %v839 = vsel %vm197, %v514, %v828
    %v840 = vsel %vm197, %v586, %v830
    %vm841 = vcmask 310272
    %v842 = vsel %vm841, %v836, 0.0
    %v843 = vsel %vm841, %v837, 0.0
    %v844 = vsel %vm841, %v838, 0.0
    %v845 = vsel %vm841, %v839, 0.0
    %v846 = vsel %vm841, %v840, 0.0
    %847 = vst [vmem:[#allocation10] sm:$0xff] %v842
    %848 = vst [vmem:[#allocation10 + $0x8] sm:$0xff] %v843
    %849 = vst [vmem:[#allocation10 + $0x10] sm:$0xff] %v844
    %850 = vst [vmem:[#allocation10 + $0x18] sm:$0xff] %v845
    %851 = vst [vmem:[#allocation10 + $0x20] sm:$0xff] %v846
    // Predicated region
    $region38: #{tpu_custom_call.1} parent=1 // pred_check
      _
    $region39: #{tpu_custom_call.1} parent=1 // pred_check_branch
      %853 = sbr.rel (0) target = $region41
    $region40: #{tpu_custom_call.1} parent=1 // pred_region
      %s855 = ssub.s32 640, 640
      %856 = vsyncadd [#allocation4], %s855
      %s857 = sshll.u32 [#allocation10], 4
      %s858 = int_to_ptr.vmem [resolvable:$true] %s857
      %863 = dma.vmem_to_hbm [thread:$0]  %s858, 640, %s5, [#allocation4], 128, 128, 8
    $region41: #{tpu_custom_call.1} parent=1 // pred_fallthru
      _
    // Predicated region
    $region42: #{tpu_custom_call.1} parent=1 // pred_check
      _
    $region43: #{tpu_custom_call.1} parent=1 // pred_check_branch
      %865 = sbr.rel (0) target = $region45
    $region44: #{tpu_custom_call.1} parent=1 // pred_region
      %866 = dma.done [#allocation4], 640
    $region45: #{tpu_custom_call.1} parent=1 // pred_fallthru
      _
    %867 = vsyncpa [#allocation3], 1
    %868 = vsyncpa [#allocation6], 1
    %869 = vsyncpa [#allocation9], 1
    %870 = vsyncpa [#allocation4], 1

</llo_original>
